<compile_context>
chip_gen: v5e
topology: v5e:2x2
jax: 0.10.0
libtpu: 0.0.40
codegen_flags: <defaults>
</compile_context>

<pallas_src>
import jax
import jax.numpy as jnp
from jax.experimental import pallas as pl
from jax.experimental.pallas import tpu as pltpu


_LANE = 128                      # lane width (minor dim of every vreg tile)
_SUBLANE = 16                    # sublane pack for bf16 tiles (also valid for f32)
_VMEM_LIMIT = 48 * 1024 * 1024   # safe scoped-VMEM request on v5e/v6e (128 MiB) and v7x (64 MiB)


def _round_up(x, m):
    return (x + m - 1) // m * m


def _pick_tile_m(m, num_patches, tile_m):
    """Pick the M tile: <= tile_m, multiple of the sublane pack, preferring a
    tile that divides M exactly (no M padding -> post-kernel row slice is a
    no-op) and that covers whole images (multiple of num_patches)."""
    cap = max(_SUBLANE, min(tile_m, m) // _SUBLANE * _SUBLANE)
    # Whole-image tiles that divide M exactly.
    for k in range(cap // num_patches, 0, -1):
        cand = k * num_patches
        if cand % _SUBLANE == 0 and m % cand == 0:
            return cand
    # Any sublane-aligned divisor of M.
    for cand in range(cap, _SUBLANE - 1, -_SUBLANE):
        if m % cand == 0:
            return cand
    # Fall back: pad M up to a multiple of the tile.
    return _round_up(min(tile_m, m), _SUBLANE)


def _patch_embed_kernel(x_ref, w_ref, b_ref, o_ref):
    # x_ref: (TM, Kp) compute-dtype flattened patch rows (pipelined per grid step)
    # w_ref: (Kp, Np) compute-dtype flattened conv weight (constant index -> VMEM-resident)
    # b_ref: (1,  Np) f32 bias
    # o_ref: (TM, Np) out-dtype projected patches
    acc = jnp.dot(x_ref[...], w_ref[...], preferred_element_type=jnp.float32)
    o_ref[...] = (acc + b_ref[...]).astype(o_ref.dtype)


def patch_embedding(x, weight, bias, patch_size, *, tile_m=1024,
                    compute_dtype=jnp.bfloat16, out_dtype=jnp.bfloat16):
    """Equivalent of nn.Conv2d(C, E, kernel_size=P, stride=P) followed by
    rearrange 'b c h w -> b (h w) c'.

    x:      (B, C, H, W)   float32, NCHW
    weight: (E, C, P, P)   float32 (PyTorch Conv2d weight layout)
    bias:   (E,)           float32
    returns (B, (H//P)*(W//P), E) in `out_dtype` (bf16 default; pass
            out_dtype=jnp.float32 to match the f32 module exactly up to the
            bf16-operand MXU rounding).
    """
    B, C, H, W = x.shape
    E = weight.shape[0]
    P = patch_size
    hp, wp = H // P, W // P
    num_patches = hp * wp
    M = B * num_patches
    K = C * P * P

    cbytes = jnp.dtype(compute_dtype).itemsize
    obytes = jnp.dtype(out_dtype).itemsize

    # ---- layout work: one fused XLA convert+transpose in compute_dtype ------
    # (half the write bytes of an f32 patch matrix; see TODO(synk) in header
    # for fusing this gather into the kernel itself.)
    patches = x.astype(compute_dtype).reshape(B, C, hp, P, wp, P)
    patches = jnp.transpose(patches, (0, 2, 4, 1, 3, 5))     # (B, hp, wp, C, P, P)
    patches = patches.reshape(M, K)                           # rows=(b,ph,pw), cols=(c,kh,kw)

    # Conv weight (E, C, P, P) -> (K, E); same (c, kh, kw) flattening order.
    w_mat = weight.reshape(E, K).T.astype(compute_dtype)
    b_row = bias.reshape(1, E).astype(jnp.float32)

    # ---- padding: exact (zeros), a no-op for standard ViT configs -----------
    # Pad K/E to 128 only (not 256): K=E=768/1024 already map to whole 256-wide
    # MXU tiles on v6e/v7x, and extra zero columns for tiny E just add work.
    Kp = _round_up(K, _LANE)       # lane-aligned contraction
    Np = _round_up(E, _LANE)       # lane-dense (unmasked) output stores

    # ---- tile-M selection ----------------------------------------------------
    # Cap tile_m so the double-buffered working set fits the scoped-VMEM
    # request (the binding constraint is v7x's 64 MiB physical VMEM).
    resident = 2 * Kp * Np * cbytes + 2 * Np * 4          # weight + bias buffers
    per_row = 2 * (Kp * cbytes + Np * obytes)             # in + out tiles, double-buffered
    budget = _VMEM_LIMIT - resident - (4 << 20)           # slack for misc scratch
    if budget > 0:
        tile_m = min(tile_m, max(_SUBLANE, budget // per_row))
    TM = _pick_tile_m(M, num_patches, tile_m)
    Mp = _round_up(M, TM)

    if Kp != K:
        patches = jnp.pad(patches, ((0, 0), (0, Kp - K)))
        w_mat = jnp.pad(w_mat, ((0, Kp - K), (0, 0)))
    if Np != E:
        w_mat = jnp.pad(w_mat, ((0, 0), (0, Np - E)))
        b_row = jnp.pad(b_row, ((0, 0), (0, Np - E)))
    if Mp != M:
        patches = jnp.pad(patches, ((0, Mp - M), (0, 0)))

    grid = (Mp // TM,)   # note: for large-batch configs grid stays >= 4 so both
                         # v7x TensorCores get balanced, pipelined work.

    cost = pl.CostEstimate(
        flops=2 * Mp * Kp * Np,
        transcendentals=0,
        bytes_accessed=(patches.size * cbytes      # patch reads
                        + w_mat.size * cbytes      # weight (read once, stays resident)
                        + b_row.size * 4
                        + Mp * Np * obytes),       # output writes
    )

    out = pl.pallas_call(
        _patch_embed_kernel,
        out_shape=jax.ShapeDtypeStruct((Mp, Np), out_dtype),
        grid_spec=pltpu.PrefetchScalarGridSpec(
            num_scalar_prefetch=0,
            grid=grid,
            in_specs=[
                pl.BlockSpec((TM, Kp), lambda i: (i, 0)),   # M-tiled, double-buffered
                # Constant index maps: the DMA is issued once and the blocks
                # stay VMEM-resident across the whole grid.  (Follow-up: single
                # buffer them with pipeline_mode=pl.Buffered(1) to reclaim the
                # redundant second buffer on VMEM-tight configs.)
                pl.BlockSpec((Kp, Np), lambda i: (0, 0)),
                pl.BlockSpec((1, Np), lambda i: (0, 0)),
            ],
            out_specs=pl.BlockSpec((TM, Np), lambda i: (i, 0)),
        ),
        compiler_params=pltpu.CompilerParams(
            # Independent M tiles -> shard across both TensorCores on v7x
            # (harmless on single-TC v5e/v6e).
            dimension_semantics=("parallel",),
            vmem_limit_bytes=_VMEM_LIMIT,
        ),
        cost_estimate=cost,
    )(patches, w_mat, b_row)

    out = out[:M, :E]   # no-op when TM | M and E % 128 == 0 (standard ViT)
    return out.reshape(B, num_patches, E)


if __name__ == "__main__":
    # Small shapes consistent with the module: B=2, C=4, H=W=16, P=4, E=32.
    B, C, H, W = 2, 4, 16, 16
    P = 4
    E = 32

    key = jax.random.PRNGKey(0)
    kx, kw, kb = jax.random.split(key, 3)

    x = jax.random.normal(kx, (B, C, H, W), dtype=jnp.float32)
    # Deterministic parameters (shapes from nn.Conv2d(C, E, P, stride=P)).
    fan_in = C * P * P
    bound = 1.0 / (fan_in ** 0.5)
    weight = jax.random.uniform(kw, (E, C, P, P), jnp.float32, -bound, bound)
    bias = jax.random.uniform(kb, (E,), jnp.float32, -bound, bound)

    hp, wp = H // P, W // P
    num_patches = hp * wp

    # f32 conv reference (same semantics as the torch module).
    ref = jax.lax.conv_general_dilated(
        x, weight, window_strides=(P, P), padding="VALID",
        dimension_numbers=("NCHW", "OIHW", "NCHW"),
    ) + bias.reshape(1, E, 1, 1)
    ref = jnp.transpose(ref.reshape(B, E, -1), (0, 2, 1))     # b c h w -> b (h w) c

    # 1) Default fast path: bf16 MXU operands, bf16 output.
    out_bf16 = patch_embedding(x, weight, bias, P)
    jax.block_until_ready(out_bf16)
    assert out_bf16.shape == (B, num_patches, E)
    assert out_bf16.dtype == jnp.bfloat16
    assert jnp.allclose(out_bf16.astype(jnp.float32), ref, atol=5e-2, rtol=5e-2)

    # 2) f32-output knob: matches a bf16-operand / f32-accumulate reference tightly.
    out_f32 = patch_embedding(x, weight, bias, P, out_dtype=jnp.float32)
    jax.block_until_ready(out_f32)
    patches_ref = x.astype(jnp.bfloat16).reshape(B, C, hp, P, wp, P)
    patches_ref = jnp.transpose(patches_ref, (0, 2, 4, 1, 3, 5))
    patches_ref = patches_ref.reshape(B * num_patches, C * P * P)
    w_ref = weight.reshape(E, C * P * P).T.astype(jnp.bfloat16)
    ref_bf16ops = jnp.dot(patches_ref, w_ref, preferred_element_type=jnp.float32)
    ref_bf16ops = (ref_bf16ops + bias.reshape(1, E)).reshape(B, num_patches, E)
    assert out_f32.dtype == jnp.float32
    assert jnp.allclose(out_f32, ref_bf16ops, atol=1e-3, rtol=1e-3)
    assert jnp.allclose(out_f32, ref, atol=5e-2, rtol=5e-2)

    print("KERNEL_OK")
</pallas_src>

<mosaic_0001>
module attributes {stable_mosaic.version = 11 : i64} {
  func.func @_patch_embed_kernel(%arg0: i32, %arg1: memref<32x128xbf16, #tpu.memory_space<vmem>>, %arg2: memref<128x128xbf16, #tpu.memory_space<vmem>>, %arg3: memref<1x128xf32, #tpu.memory_space<vmem>>, %arg4: memref<32x128xbf16, #tpu.memory_space<vmem>>) attributes {dimension_semantics = [#tpu.dimension_semantics<parallel>], iteration_bounds = array<i64: 1>, scalar_prefetch = 0 : i64, scratch_operands = 0 : i64, tpu.core_type = #tpu.core_type<tc>, window_params = [{transform_indices = @transform_0, window_bounds = array<i64: 32, 128>}, {pipeline_mode = #tpu.pipeline_mode<synchronous>, transform_indices = @transform_1, window_bounds = array<i64: 128, 128>}, {pipeline_mode = #tpu.pipeline_mode<synchronous>, transform_indices = @transform_2, window_bounds = array<i64: 1, 128>}, {transform_indices = @transform_3, window_bounds = array<i64: 32, 128>}]} {
    %c0 = arith.constant 0 : index
    %c0_0 = arith.constant 0 : index
    %0 = vector.load %arg1[%c0, %c0_0] : memref<32x128xbf16, #tpu.memory_space<vmem>>, vector<32x128xbf16>
    %c0_1 = arith.constant 0 : index
    %c0_2 = arith.constant 0 : index
    %1 = vector.load %arg2[%c0_1, %c0_2] : memref<128x128xbf16, #tpu.memory_space<vmem>>, vector<128x128xbf16>
    %cst = arith.constant dense<0.000000e+00> : vector<32x128xf32>
    %2 = tpu.matmul %0, %1, %cst {dimension_numbers = #tpu.dot_dimension_numbers<[1], [0], [0], [1], [0, 0, 1, 1], [], []>} : vector<32x128xbf16>, vector<128x128xbf16>, vector<32x128xf32> -> vector<32x128xf32>
    %c0_3 = arith.constant 0 : index
    %c0_4 = arith.constant 0 : index
    %3 = vector.load %arg3[%c0_3, %c0_4] : memref<1x128xf32, #tpu.memory_space<vmem>>, vector<1x128xf32>
    %4 = vector.broadcast %3 : vector<1x128xf32> to vector<32x128xf32>
    %5 = arith.addf %2, %4 : vector<32x128xf32>
    %6 = arith.truncf %5 : vector<32x128xf32> to vector<32x128xbf16>
    %c0_5 = arith.constant 0 : index
    %c0_6 = arith.constant 0 : index
    %7 = vector.load %arg4[%c0_5, %c0_6] : memref<32x128xbf16, #tpu.memory_space<vmem>>, vector<32x128xbf16>
    tpu.vector_store %arg4[%c0_5, %c0_6], %6 {strides = array<i32>} : memref<32x128xbf16, #tpu.memory_space<vmem>>, vector<32x128xbf16>,
    return
  }
  func.func @transform_0(%arg0: i32) -> (i32, i32) {
    %c0_i32 = arith.constant 0 : i32
    %c0_i32_0 = arith.constant 0 : i32
    return %arg0, %c0_i32 : i32, i32
  }
  func.func @transform_1(%arg0: i32) -> (i32, i32) {
    %c0_i32 = arith.constant 0 : i32
    %c0_i32_0 = arith.constant 0 : i32
    %c0_i32_1 = arith.constant 0 : i32
    return %c0_i32, %c0_i32_0 : i32, i32
  }
  func.func @transform_2(%arg0: i32) -> (i32, i32) {
    %c0_i32 = arith.constant 0 : i32
    %c0_i32_0 = arith.constant 0 : i32
    %c0_i32_1 = arith.constant 0 : i32
    return %c0_i32, %c0_i32_0 : i32, i32
  }
  func.func @transform_3(%arg0: i32) -> (i32, i32) {
    %c0_i32 = arith.constant 0 : i32
    %c0_i32_0 = arith.constant 0 : i32
    return %arg0, %c0_i32 : i32, i32
  }
}

</mosaic_0001>

<llo_original>
// kernel: tpu_custom_call.1
$region0: #{tpu_custom_call.1}
  #allocation0 [shape = 'u32[]', space=smem, size = 0x4, offset = 0x4, fixed_abs, tag = 'smem constant byte address 0x4 - core index']
  #allocation1 [shape = 'u32[72,128]{1,0:T(1,128)}', space=vmem, size = 0x9000, scoped, tag = 'internal scratch']
  %s0 = inlined_call_operand.hbm [shape: bf16[32,128], index: 0, kind: input, shape index: {}]
  %s1 = inlined_call_operand.hbm [shape: bf16[128,128], index: 1, kind: input, shape index: {}]
  %s2 = inlined_call_operand.vmem [shape: f32[1,128], index: 2, kind: input, shape index: {}]
  %s3 = inlined_call_operand.hbm [shape: bf16[32,128], index: 3, kind: output, shape index: {}]
  %s4 = sld [smem:[#allocation0]]
  $region30: #{tpu_custom_call.1} parent=0
    _
  %s6 = ssub.s32 1, %s4
  %s7 = scalar_select 0, %s6, %s4
  $region1: #{tpu_custom_call.1} parent=0
    #allocation2 [shape = 'u8[8192]{0}', space=vmem, size = 0x2000, scoped, tag = 'input window, operand 0, single buffered']
    #allocation3 [shape = 's32[1]{0}', space=sflag, size = 0x4, scoped, tag = 'scoped memory for tpu_custom_call.1']
    #allocation4 [shape = 's32[1]{0}', space=sflag, size = 0x4, scoped, tag = 'scoped memory for tpu_custom_call.1']
    #allocation5 [shape = 'u8[32768]{0}', space=vmem, size = 0x8000, scoped, tag = 'input window, operand 1, single buffered']
    #allocation6 [shape = 's32[1]{0}', space=sflag, size = 0x4, scoped, tag = 'scoped memory for tpu_custom_call.1']
    #allocation7 [shape = 'u8[8192]{0}', space=vmem, size = 0x2000, scoped, tag = 'output window, operand 0, single buffered']
    %8 = vsyncpa [#allocation3], 0
    %9 = vsyncpa [#allocation6], 0
    %10 = vsyncpa [#allocation4], 0
    // Predicated region
    $region2: #{tpu_custom_call.1} parent=1 // pred_check
      _
    $region3: #{tpu_custom_call.1} parent=1 // pred_check_branch
      %12 = sbr.rel (0) target = $region5
    $region4: #{tpu_custom_call.1} parent=1 // pred_region
      %14 = vsyncadd [#allocation3], 0
      %s15 = sshll.u32 %s0, 4
      %s16 = int_to_ptr.hbm [resolvable:$true] %s15
      %s17 = sshll.u32 [#allocation2], 4
      %s18 = int_to_ptr.vmem [resolvable:$true] %s17
      %23 = dma.hbm_to_vmem [thread:$0]  %s16, 256, %s18, [#allocation3], 64, 64, 4
    $region5: #{tpu_custom_call.1} parent=1 // pred_fallthru
      _
    // Predicated region
    $region6: #{tpu_custom_call.1} parent=1 // pred_check
      _
    $region7: #{tpu_custom_call.1} parent=1 // pred_check_branch
      %25 = sbr.rel (0) target = $region9
    $region8: #{tpu_custom_call.1} parent=1 // pred_region
      %27 = vsyncadd [#allocation6], 0
      %s28 = sshll.u32 %s1, 4
      %s29 = int_to_ptr.hbm [resolvable:$true] %s28
      %s30 = sshll.u32 [#allocation5], 4
      %s31 = int_to_ptr.vmem [resolvable:$true] %s30
      %36 = dma.hbm_to_vmem [thread:$0]  %s29, 1024, %s31, [#allocation6], 64, 64, 4
    $region9: #{tpu_custom_call.1} parent=1 // pred_fallthru
      _
    // Predicated region
    $region10: #{tpu_custom_call.1} parent=1 // pred_check
      _
    $region11: #{tpu_custom_call.1} parent=1 // pred_check_branch
      %38 = sbr.rel (0) target = $region13
    $region12: #{tpu_custom_call.1} parent=1 // pred_region
      _
    $region13: #{tpu_custom_call.1} parent=1 // pred_fallthru
      _
    // Predicated region
    $region14: #{tpu_custom_call.1} parent=1 // pred_check
      _
    $region15: #{tpu_custom_call.1} parent=1 // pred_check_branch
      %40 = sbr.rel (0) target = $region17
    $region16: #{tpu_custom_call.1} parent=1 // pred_region
      %42 = dma.done [#allocation3], 256
    $region17: #{tpu_custom_call.1} parent=1 // pred_fallthru
      _
    // Predicated region
    $region18: #{tpu_custom_call.1} parent=1 // pred_check
      _
    $region19: #{tpu_custom_call.1} parent=1 // pred_check_branch
      %44 = sbr.rel (0) target = $region21
    $region20: #{tpu_custom_call.1} parent=1 // pred_region
      %46 = dma.done [#allocation6], 1024
    $region21: #{tpu_custom_call.1} parent=1 // pred_fallthru
      _
    %v47 = vld [vmem:[#allocation2] sm:$0xf]
    %v48 = vld [vmem:[#allocation2 + $0x4] sm:$0xf]
    %v49 = vld [vmem:[#allocation2 + $0x8] sm:$0xf]
    %v50 = vld [vmem:[#allocation2 + $0xc] sm:$0xf]
    %v51 = vld [vmem:[#allocation5] sm:$0xf]
    %v52 = vld [vmem:[#allocation5 + $0x4] sm:$0xf]
    %v53 = vld [vmem:[#allocation5 + $0x8] sm:$0xf]
    %v54 = vld [vmem:[#allocation5 + $0xc] sm:$0xf]
    %v55 = vld [vmem:[#allocation5 + $0x10] sm:$0xf]
    %v56 = vld [vmem:[#allocation5 + $0x14] sm:$0xf]
    %v57 = vld [vmem:[#allocation5 + $0x18] sm:$0xf]
    %v58 = vld [vmem:[#allocation5 + $0x1c] sm:$0xf]
    %v59 = vld [vmem:[#allocation5 + $0x20] sm:$0xf]
    %v60 = vld [vmem:[#allocation5 + $0x24] sm:$0xf]
    %v61 = vld [vmem:[#allocation5 + $0x28] sm:$0xf]
    %v62 = vld [vmem:[#allocation5 + $0x2c] sm:$0xf]
    %v63 = vld [vmem:[#allocation5 + $0x30] sm:$0xf]
    %v64 = vld [vmem:[#allocation5 + $0x34] sm:$0xf]
    %v65 = vld [vmem:[#allocation5 + $0x38] sm:$0xf]
    %v66 = vld [vmem:[#allocation5 + $0x3c] sm:$0xf]
    %v67 = vld [vmem:[%s2] sm:$0x1]
    %v69 = vperm.slane %v67, 0
    %v75 = vunpack.c.l.b16 %v47
    %v76 = vunpack.c.l.b16 %v48
    %v77 = vunpack.c.l.b16 %v49
    %v78 = vunpack.c.l.b16 %v50
    %v79 = vpack.c.b16 %v76, %v75
    %v80 = vpack.c.b16 %v78, %v77
    %v99 = vunpack.c.l.b16 %v51
    %v100 = vunpack.c.l.b16 %v52
    %v101 = vunpack.c.l.b16 %v53
    %v102 = vunpack.c.l.b16 %v54
    %v103 = vunpack.c.l.b16 %v55
    %v104 = vunpack.c.l.b16 %v56
    %v105 = vunpack.c.l.b16 %v57
    %v106 = vunpack.c.l.b16 %v58
    %v107 = vunpack.c.l.b16 %v59
    %v108 = vunpack.c.l.b16 %v60
    %v109 = vunpack.c.l.b16 %v61
    %v110 = vunpack.c.l.b16 %v62
    %v111 = vunpack.c.l.b16 %v63
    %v112 = vunpack.c.l.b16 %v64
    %v113 = vunpack.c.l.b16 %v65
    %v114 = vunpack.c.l.b16 %v66
    %v115 = vpack.c.b16 %v100, %v99
    %v116 = vpack.c.b16 %v102, %v101
    %v117 = vpack.c.b16 %v104, %v103
    %v118 = vpack.c.b16 %v106, %v105
    %v119 = vpack.c.b16 %v108, %v107
    %v120 = vpack.c.b16 %v110, %v109
    %v121 = vpack.c.b16 %v112, %v111
    %v122 = vpack.c.b16 %v114, %v113
    %131 = vmatpush.bf16.msra.mxu0 %v122
    %132 = vmatpush.bf16.msra.mxu0 %v121
    %133 = vmatpush.bf16.msra.mxu0 %v120
    %134 = vmatpush.bf16.msra.mxu0 %v119
    %135 = vmatpush.bf16.msra.mxu0 %v118
    %136 = vmatpush.bf16.msra.mxu0 %v117
    %137 = vmatpush.bf16.msra.mxu0 %v116
    %138 = vmatpush.bf16.msra.mxu0 %v115
    %139 = vmatmul.bf16.gmra.mxu0 %v79
    %v140 = vpop.f32.mrf.mxu0
    %v141 = vadd.f32 %v69, %v140
    %v142 = vpop.f32.mrf.mxu0
    %v143 = vadd.f32 %v69, %v142
    %144 = vmatmul.bf16.gmra.mxu0 %v80
    %v145 = vpop.f32.mrf.mxu0
    %v146 = vadd.f32 %v69, %v145
    %v147 = vpop.f32.mrf.mxu0
    %v148 = vadd.f32 %v69, %v147
    %149 = vdwg.mxu0
    %v150 = vpack.c.bf16 %v141, %v141
    %v151 = vpack.c.bf16 %v143, %v143
    %v152 = vpack.c.bf16 %v146, %v146
    %v153 = vpack.c.bf16 %v148, %v148
    %154 = vst [vmem:[#allocation7] sm:$0xf] %v150
    %155 = vst [vmem:[#allocation7 + $0x4] sm:$0xf] %v151
    %156 = vst [vmem:[#allocation7 + $0x8] sm:$0xf] %v152
    %157 = vst [vmem:[#allocation7 + $0xc] sm:$0xf] %v153
    // Predicated region
    $region22: #{tpu_custom_call.1} parent=1 // pred_check
      _
    $region23: #{tpu_custom_call.1} parent=1 // pred_check_branch
      %159 = sbr.rel (0) target = $region25
    $region24: #{tpu_custom_call.1} parent=1 // pred_region
      %161 = vsyncadd [#allocation4], 0
      %s162 = sshll.u32 [#allocation7], 4
      %s163 = int_to_ptr.vmem [resolvable:$true] %s162
      %s164 = sshll.u32 %s3, 4
      %s165 = int_to_ptr.hbm [resolvable:$true] %s164
      %170 = dma.vmem_to_hbm [thread:$0]  %s163, 256, %s165, [#allocation4], 64, 64, 4
    $region25: #{tpu_custom_call.1} parent=1 // pred_fallthru
      _
    // Predicated region
    $region26: #{tpu_custom_call.1} parent=1 // pred_check
      _
    $region27: #{tpu_custom_call.1} parent=1 // pred_check_branch
      %172 = sbr.rel (0) target = $region29
    $region28: #{tpu_custom_call.1} parent=1 // pred_region
      %174 = dma.done [#allocation4], 256
    $region29: #{tpu_custom_call.1} parent=1 // pred_fallthru
      _
    %175 = vsyncpa [#allocation3], 1
    %176 = vsyncpa [#allocation6], 1
    %177 = vsyncpa [#allocation4], 1

</llo_original>
